<compile_context>
chip_gen: v7x
topology: tpu7x:2x2x1
jax: 0.10.0
libtpu: 0.0.40
codegen_flags: <defaults>
</compile_context>

<pallas_src>
import functools

import jax
import jax.numpy as jnp
from jax.experimental import pallas as pl
from jax.experimental.pallas import tpu as pltpu


def _round_up(v, m):
    return ((v + m - 1) // m) * m


def _focal_loss_kernel(logits_ref, target_ref, out_ref, *, gamma, alpha,
                       n_rows, tile_n):
    i = pl.program_id(0)

    x = logits_ref[...]                      # (TILE_N, C), native dtype (f32 / bf16)
    tn, c = x.shape

    # Lane-dense (1, TILE_N) target block -> (TILE_N, 1) column. XLU relayout; the XLU
    # slot is idle here so this is essentially free and avoids the old lane-padded
    # (TILE_N, 1) input block + strided 4-byte DMA.
    t = jnp.transpose(target_ref[...], (1, 0))                          # (TILE_N, 1)

    # Row max + one-hot gather on the native tile (max/compare/select are bit-exact in
    # bf16, and run packed 2 rows per vreg on v6e/v7x).
    m = jnp.max(x, axis=-1, keepdims=True).astype(jnp.float32)          # (TILE_N, 1)
    col = jax.lax.broadcasted_iota(jnp.int32, (tn, c), 1)
    onehot = col == t
    s_t = jnp.sum(jnp.where(onehot, x, 0.0), axis=-1,
                  keepdims=True).astype(jnp.float32)                    # (TILE_N, 1)

    # f32 exp / logsumexp (EUP).  log-softmax gathered value without ever
    # materializing the full log_softmax tile:  logpt = x[t] - m - log(sum(exp(x-m))).
    xf = x.astype(jnp.float32)
    lse = jnp.log(jnp.sum(jnp.exp(xf - m), axis=-1, keepdims=True))     # (TILE_N, 1)
    logpt = s_t - m - lse
    pt = jnp.exp(logpt)

    # alpha weighting: alpha where target > 0, (1 - alpha) otherwise.
    w = jnp.where(t > 0, jnp.float32(alpha), jnp.float32(1.0 - alpha))
    logpt_w = logpt * w

    # Focal factor (1 - pt)**gamma; integer-gamma fast path avoids pow (EUP log+exp)
    # and the NaN risk of a fractional power of a slightly-negative base.
    omp = jnp.maximum(1.0 - pt, 0.0)
    g = float(gamma)
    if g == 0.0:
        focal = jnp.ones_like(omp)
    elif g.is_integer() and 1.0 <= g <= 4.0:
        focal = omp
        for _ in range(int(g) - 1):
            focal = focal * omp
    else:
        focal = omp ** jnp.float32(g)

    loss = -focal * logpt_w                                             # (TILE_N, 1)

    # Mask rows past the true N (ragged last tile / block larger than array). Select,
    # not multiply, so NaN/Inf from garbage padding rows cannot poison the sum.
    row = jax.lax.broadcasted_iota(jnp.int32, (tn, 1), 0) + i * tile_n
    loss = jnp.where(row < n_rows, loss, 0.0)

    total = jnp.sum(loss)

    # Lane-dense (1, 128) partial-sum block: value in lane 0, zeros elsewhere, so the
    # wrapper's jnp.sum over all partial blocks equals the sum of per-tile totals.
    lane = jax.lax.broadcasted_iota(jnp.int32, (1, 128), 1)
    out_ref[...] = jnp.where(lane == 0, total, jnp.float32(0.0))


def _vmem_capacity_bytes():
    """Per-core VMEM capacity; conservative (v7x) fallback if the query fails."""
    try:
        info = pltpu.get_tpu_info()
        cap = getattr(info, "vmem_capacity_bytes", None)
        if cap:
            return int(cap)
    except Exception:
        pass
    return 64 * 1024 * 1024


def _plan_tiles(n, c, dtype, tile_n=None):
    """Pick the row tile from a generation-aware VMEM budget.

    Budget = min(capacity/2, 48 MiB)  (v7x: 32 MiB, v5e/v6e: 48 MiB), accounting for
    double-buffered logits + lane-dense target blocks AND headroom for ~two live f32
    full-tile temporaries inside the kernel, so scoped VMEM cannot overflow.
    """
    itemsize = jnp.dtype(dtype).itemsize
    sub = 16 if itemsize < 4 else 8           # sublane quantum (bf16 packs 2 rows)
    c_pad = _round_up(max(c, 128), 128)       # VMEM lane padding of the class dim

    per_row = 2 * (c_pad * itemsize + 32) + 2 * c_pad * 4

    cap = _vmem_capacity_bytes()
    budget = min(cap // 2, 48 * 1024 * 1024)

    if tile_n is None:
        tile = max(1, budget // per_row)
        tile = min(tile, 32768)
    else:
        tile = max(1, int(tile_n))

    if tile >= n:
        tile = _round_up(max(n, 1), sub)      # single tile covering all rows
    else:
        # Multi-tile: the lane-dense target block needs a 128-multiple lane width.
        tile = max(128, (tile // 128) * 128)
        if tile >= n:
            tile = _round_up(n, sub)

    num_tiles = (n + tile - 1) // tile

    logits_blk = tile * c_pad * itemsize
    target_blk = 8 * tile * 4                 # (1, tile) i32, sublane-padded to 8
    out_blk = 8 * 128 * 4
    working = 2 * (logits_blk + target_blk + out_blk) + 2 * tile * c_pad * 4
    vmem_limit = int(min(max(working + (4 << 20), 16 << 20), (cap * 3) // 4))
    return tile, num_tiles, vmem_limit


def focal_loss(logits, target, *, gamma=2.0, alpha=0.25, size_average=True,
               tile_n=None):
    """Pallas-backed FocalLoss forward. logits: [N, C] (f32/bf16), target: [N] int."""
    n, c = logits.shape
    if n == 0:                                # degenerate edge case
        total = jnp.float32(0.0)
        return total / jnp.float32(n) if size_average else total

    tile, num_tiles, vmem_limit = _plan_tiles(n, c, logits.dtype, tile_n)

    # Lane-dense target row, zero-padded to an exact multiple of the tile width.
    padded_n = num_tiles * tile
    target_row = target.reshape(1, n).astype(jnp.int32)
    if padded_n != n:
        target_row = jnp.pad(target_row, ((0, 0), (0, padded_n - n)))

    kernel = functools.partial(
        _focal_loss_kernel,
        gamma=float(gamma),
        alpha=float(alpha),
        n_rows=n,
        tile_n=tile,
    )

    itemsize = jnp.dtype(logits.dtype).itemsize
    cost = pl.CostEstimate(
        flops=6 * n * c,
        transcendentals=n * c + 2 * n,
        bytes_accessed=n * c * itemsize + padded_n * 4 + num_tiles * 128 * 4,
    )

    grid_spec = pltpu.PrefetchScalarGridSpec(
        num_scalar_prefetch=0,
        grid=(num_tiles,),
        in_specs=[
            pl.BlockSpec((tile, c), lambda i: (i, 0)),    # logits row tile (native dtype)
            pl.BlockSpec((1, tile), lambda i: (0, i)),    # lane-dense target tile
        ],
        out_specs=pl.BlockSpec((1, 128), lambda i: (0, i)),  # lane-dense partial sums
    )

    partials = pl.pallas_call(
        kernel,
        out_shape=jax.ShapeDtypeStruct((1, num_tiles * 128), jnp.float32),
        grid_spec=grid_spec,
        compiler_params=pltpu.CompilerParams(
            dimension_semantics=("parallel",),   # independent row tiles -> megacore
            vmem_limit_bytes=vmem_limit,
        ),
        cost_estimate=cost,
    )(logits, target_row)                        # NOTE: no wrapper dtype upcast

    total = jnp.sum(partials)                    # only lane 0 of each tile is nonzero
    if size_average:
        return total / jnp.float32(n)
    return total


def _reference(logits, target, gamma, alpha, size_average):
    log_sm = jax.nn.log_softmax(logits.astype(jnp.float32), axis=-1)
    logpt = jnp.take_along_axis(log_sm, target.reshape(-1, 1), axis=-1).reshape(-1)
    pt = jnp.exp(logpt)
    pos = (target > 0).astype(jnp.float32)
    logpt = logpt * alpha * pos + logpt * (1.0 - alpha) * (1.0 - pos)
    loss = -1.0 * (1.0 - pt) ** gamma * logpt
    return jnp.mean(loss) if size_average else jnp.sum(loss)


if __name__ == "__main__":
    key = jax.random.PRNGKey(0)
    k_logits, k_target, k_logits2, k_target2 = jax.random.split(key, 4)

    N, C = 8, 32                       # small shapes: 8 samples, 32 classes
    gamma, alpha = 2.0, 0.25           # module hyperparameters (deterministic)

    logits = jax.random.normal(k_logits, (N, C), dtype=jnp.float32)
    target = jax.random.randint(k_target, (N,), 0, C, dtype=jnp.int32)

    # 1) single-tile f32, mean reduction
    out = focal_loss(logits, target, gamma=gamma, alpha=alpha, size_average=True)
    out = jax.block_until_ready(out)
    ref = _reference(logits, target, gamma, alpha, True)
    assert jnp.allclose(out, ref, rtol=1e-5, atol=1e-6), (out, ref)

    # 2) multi-tile path with a ragged last tile (grid > 1 + lane-dense target tiles
    #    + tail masking); tile_n=128 keeps the lane-dense target block 128-aligned.
    N2 = 300
    logits2 = jax.random.normal(k_logits2, (N2, C), dtype=jnp.float32)
    target2 = jax.random.randint(k_target2, (N2,), 0, C, dtype=jnp.int32)
    out2 = focal_loss(logits2, target2, gamma=gamma, alpha=alpha,
                      size_average=True, tile_n=128)
    out2 = jax.block_until_ready(out2)
    ref2 = _reference(logits2, target2, gamma, alpha, True)
    assert jnp.allclose(out2, ref2, rtol=1e-5, atol=1e-6), (out2, ref2)

    # 3) bf16 logits stay bf16 to HBM (no wrapper upcast), native-dtype max/gather
    #    inside the kernel, sum reduction.
    logits_bf = logits.astype(jnp.bfloat16)
    out3 = jax.block_until_ready(
        focal_loss(logits_bf, target, gamma=gamma, alpha=alpha, size_average=False))
    ref3 = _reference(logits_bf, target, gamma, alpha, False)
    assert jnp.allclose(out3, ref3, rtol=1e-4, atol=1e-5), (out3, ref3)

    print("KERNEL_OK")
</pallas_src>

<mosaic_0001>
module attributes {stable_mosaic.version = 11 : i64} {
  func.func @_focal_loss_kernel(%arg0: i32, %arg1: memref<8x32xf32, #tpu.memory_space<vmem>>, %arg2: memref<1x8xi32, #tpu.memory_space<vmem>>, %arg3: memref<1x128xf32, #tpu.memory_space<vmem>>) attributes {dimension_semantics = [#tpu.dimension_semantics<parallel>], iteration_bounds = array<i64: 1>, scalar_prefetch = 0 : i64, scratch_operands = 0 : i64, tpu.core_type = #tpu.core_type<tc>, window_params = [{transform_indices = @transform_0, window_bounds = array<i64: 8, 32>}, {transform_indices = @transform_1, window_bounds = array<i64: 1, 8>}, {transform_indices = @transform_2, window_bounds = array<i64: 1, 128>}]} {
    %c0 = arith.constant 0 : index
    %c0_0 = arith.constant 0 : index
    %0 = vector.load %arg1[%c0, %c0_0] : memref<8x32xf32, #tpu.memory_space<vmem>>, vector<8x32xf32>
    %c0_1 = arith.constant 0 : index
    %c0_2 = arith.constant 0 : index
    %1 = vector.load %arg2[%c0_1, %c0_2] : memref<1x8xi32, #tpu.memory_space<vmem>>, vector<1x8xi32>
    %2 = tpu.transpose %1, [1, 0] : vector<1x8xi32> -> vector<8x1xi32>
    %cst = arith.constant dense<0xFF800000> : vector<8xf32>
    %3 = vector.multi_reduction <maximumf>, %0, %cst [1] : vector<8x32xf32> to vector<8xf32>
    %4 = vector.shape_cast %3 : vector<8xf32> to vector<8x1xf32>
    %5 = tpu.iota {dimensions = array<i32: 1>} : vector<8x32xi32>
    %6 = vector.broadcast %2 : vector<8x1xi32> to vector<8x32xi32>
    %7 = arith.cmpi eq, %5, %6 : vector<8x32xi32>
    %cst_3 = arith.constant 0.000000e+00 : f32
    %8 = vector.broadcast %cst_3 : f32 to vector<8x32xf32>
    %9 = arith.select %7, %0, %8 : vector<8x32xi1>, vector<8x32xf32>
    %cst_4 = arith.constant dense<0.000000e+00> : vector<8xf32>
    %10 = vector.multi_reduction <add>, %9, %cst_4 [1] : vector<8x32xf32> to vector<8xf32>
    %11 = vector.shape_cast %10 : vector<8xf32> to vector<8x1xf32>
    %12 = vector.broadcast %4 : vector<8x1xf32> to vector<8x32xf32>
    %13 = arith.subf %0, %12 : vector<8x32xf32>
    %14 = math.exp %13 : vector<8x32xf32>
    %cst_5 = arith.constant dense<0.000000e+00> : vector<8xf32>
    %15 = vector.multi_reduction <add>, %14, %cst_5 [1] : vector<8x32xf32> to vector<8xf32>
    %16 = vector.shape_cast %15 : vector<8xf32> to vector<8x1xf32>
    %17 = math.log %16 : vector<8x1xf32>
    %18 = arith.subf %11, %4 : vector<8x1xf32>
    %19 = arith.subf %18, %17 : vector<8x1xf32>
    %20 = math.exp %19 : vector<8x1xf32>
    %c0_i32 = arith.constant 0 : i32
    %21 = vector.broadcast %c0_i32 : i32 to vector<8x1xi32>
    %22 = arith.cmpi sgt, %2, %21 : vector<8x1xi32>
    %cst_6 = arith.constant 2.500000e-01 : f32
    %cst_7 = arith.constant 7.500000e-01 : f32
    %23 = vector.broadcast %cst_6 : f32 to vector<8x1xf32>
    %24 = vector.broadcast %cst_7 : f32 to vector<8x1xf32>
    %25 = arith.select %22, %23, %24 : vector<8x1xi1>, vector<8x1xf32>
    %26 = arith.mulf %19, %25 : vector<8x1xf32>
    %cst_8 = arith.constant 1.000000e+00 : f32
    %27 = vector.broadcast %cst_8 : f32 to vector<8x1xf32>
    %28 = arith.subf %27, %20 : vector<8x1xf32>
    %cst_9 = arith.constant 0.000000e+00 : f32
    %29 = vector.broadcast %cst_9 : f32 to vector<8x1xf32>
    %30 = arith.maximumf %28, %29 : vector<8x1xf32>
    %31 = arith.mulf %30, %30 : vector<8x1xf32>
    %cst_10 = arith.constant 0.000000e+00 : f32
    %32 = vector.broadcast %cst_10 : f32 to vector<8x1xf32>
    %33 = arith.subf %32, %31 : vector<8x1xf32>
    %34 = arith.mulf %33, %26 : vector<8x1xf32>
    %35 = tpu.iota {dimensions = array<i32: 0>} : vector<8x1xi32>
    %c8_i32 = arith.constant 8 : i32
    %36 = arith.muli %arg0, %c8_i32 : i32
    %37 = vector.broadcast %36 : i32 to vector<8x1xi32>
    %38 = arith.addi %35, %37 : vector<8x1xi32>
    %c8_i32_11 = arith.constant 8 : i32
    %39 = vector.broadcast %c8_i32_11 : i32 to vector<8x1xi32>
    %40 = arith.cmpi slt, %38, %39 : vector<8x1xi32>
    %cst_12 = arith.constant 0.000000e+00 : f32
    %41 = vector.broadcast %cst_12 : f32 to vector<8x1xf32>
    %42 = arith.select %40, %34, %41 : vector<8x1xi1>, vector<8x1xf32>
    %43 = vector.shape_cast %42 : vector<8x1xf32> to vector<1x8x1xf32>
    %cst_13 = arith.constant dense<0.000000e+00> : vector<1xf32>
    %44 = vector.multi_reduction <add>, %43, %cst_13 [1, 2] : vector<1x8x1xf32> to vector<1xf32>
    %45 = vector.shape_cast %44 : vector<1xf32> to vector<1x1x1xf32>
    %46 = vector.extract %45[0, 0, 0] : f32 from vector<1x1x1xf32>
    %47 = tpu.iota {dimensions = array<i32: 1>} : vector<1x128xi32>
    %c0_i32_14 = arith.constant 0 : i32
    %48 = vector.broadcast %c0_i32_14 : i32 to vector<1x128xi32>
    %49 = arith.cmpi eq, %47, %48 : vector<1x128xi32>
    %cst_15 = arith.constant 0.000000e+00 : f32
    %50 = vector.broadcast %46 : f32 to vector<1x128xf32>
    %51 = vector.broadcast %cst_15 : f32 to vector<1x128xf32>
    %52 = arith.select %49, %50, %51 : vector<1x128xi1>, vector<1x128xf32>
    %c0_16 = arith.constant 0 : index
    %c0_17 = arith.constant 0 : index
    %53 = vector.load %arg3[%c0_16, %c0_17] : memref<1x128xf32, #tpu.memory_space<vmem>>, vector<1x128xf32>
    tpu.vector_store %arg3[%c0_16, %c0_17], %52 {strides = array<i32>} : memref<1x128xf32, #tpu.memory_space<vmem>>, vector<1x128xf32>,
    return
  }
  func.func @transform_0(%arg0: i32) -> (i32, i32) {
    %c0_i32 = arith.constant 0 : i32
    %c0_i32_0 = arith.constant 0 : i32
    return %arg0, %c0_i32 : i32, i32
  }
  func.func @transform_1(%arg0: i32) -> (i32, i32) {
    %c0_i32 = arith.constant 0 : i32
    %c0_i32_0 = arith.constant 0 : i32
    return %c0_i32, %arg0 : i32, i32
  }
  func.func @transform_2(%arg0: i32) -> (i32, i32) {
    %c0_i32 = arith.constant 0 : i32
    %c0_i32_0 = arith.constant 0 : i32
    return %c0_i32, %arg0 : i32, i32
  }
}

</mosaic_0001>

<llo_original>
// kernel: tpu_custom_call.1
$region0: #{tpu_custom_call.1}
  #allocation0 [shape = 'u32[]', space=smem, size = 0x4, offset = 0x4, fixed_abs, tag = 'smem constant byte address 0x4 - core index']
  #allocation1 [shape = 'u32[144,128]{1,0:T(1,128)}', space=vmem, size = 0x12000, scoped, tag = 'internal scratch']
  %s0 = inlined_call_operand.hbm [shape: f32[8,32], index: 0, kind: input, shape index: {}]
  %s1 = inlined_call_operand.vmem [shape: s32[1,8], index: 1, kind: input, shape index: {}]
  %s2 = inlined_call_operand.hbm [shape: f32[1,128], index: 2, kind: output, shape index: {}]
  %s3 = sld [smem:[#allocation0]]
  $region22: #{tpu_custom_call.1} parent=0
    _
  %s5 = ssub.s32 1, %s3
  %s6 = scalar_select 0, %s5, %s3
  $region1: #{tpu_custom_call.1} parent=0
    #allocation2 [shape = 'u8[4096]{0}', space=vmem, size = 0x1000, scoped, tag = 'input window, operand 0, single buffered']
    #allocation3 [shape = 's32[1]{0}', space=sflag, size = 0x4, scoped, tag = 'scoped memory for tpu_custom_call.1']
    #allocation4 [shape = 's32[1]{0}', space=sflag, size = 0x4, scoped, tag = 'scoped memory for tpu_custom_call.1']
    #allocation5 [shape = 'u8[512]{0}', space=vmem, size = 0x400, scoped, tag = 'output window, operand 0, single buffered']
    %7 = vsyncpa [#allocation3], 0
    %8 = vsyncpa [#allocation4], 0
    // Predicated region
    $region2: #{tpu_custom_call.1} parent=1 // pred_check
      _
    $region3: #{tpu_custom_call.1} parent=1 // pred_check_branch
      %10 = sbr.rel (0) target = $region5
    $region4: #{tpu_custom_call.1} parent=1 // pred_region
      %s12 = ssub.s32 128, 128
      %13 = vsyncadd [#allocation3], %s12
      %s15 = sshll.u32 [#allocation2], 4
      %s16 = int_to_ptr.vmem [resolvable:$true] %s15
      %18 = dma.hbm_to_vmem [thread:$0]  %s0, 128, %s16, [#allocation3]
    $region5: #{tpu_custom_call.1} parent=1 // pred_fallthru
      _
    // Predicated region
    $region6: #{tpu_custom_call.1} parent=1 // pred_check
      _
    $region7: #{tpu_custom_call.1} parent=1 // pred_check_branch
      %20 = sbr.rel (0) target = $region9
    $region8: #{tpu_custom_call.1} parent=1 // pred_region
      _
    $region9: #{tpu_custom_call.1} parent=1 // pred_fallthru
      _
    // Predicated region
    $region10: #{tpu_custom_call.1} parent=1 // pred_check
      _
    $region11: #{tpu_custom_call.1} parent=1 // pred_check_branch
      %22 = sbr.rel (0) target = $region13
    $region12: #{tpu_custom_call.1} parent=1 // pred_region
      %23 = dma.done [#allocation3], 128
    $region13: #{tpu_custom_call.1} parent=1 // pred_fallthru
      _
    %v24 = vld [vmem:[#allocation2] sm:$0xff]
    %v25 = vld [vmem:[%s1] sm:$0x1]
    %26 = vxpose.xlu0.b32.start [1/16] %v25, 128
    %27 = vxpose.xlu0.b32.cont [2/16] 0, 128
    %28 = vxpose.xlu0.b32.cont [3/16] 0, 128
    %29 = vxpose.xlu0.b32.cont [4/16] 0, 128
    %30 = vxpose.xlu0.b32.cont [5/16] 0, 128
    %31 = vxpose.xlu0.b32.cont [6/16] 0, 128
    %32 = vxpose.xlu0.b32.cont [7/16] 0, 128
    %33 = vxpose.xlu0.b32.cont [8/16] 0, 128
    %34 = vxpose.xlu0.b32.cont [9/16] 0, 128
    %35 = vxpose.xlu0.b32.cont [10/16] 0, 128
    %36 = vxpose.xlu0.b32.cont [11/16] 0, 128
    %37 = vxpose.xlu0.b32.cont [12/16] 0, 128
    %38 = vxpose.xlu0.b32.cont [13/16] 0, 128
    %39 = vxpose.xlu0.b32.cont [14/16] 0, 128
    %40 = vxpose.xlu0.b32.cont [15/16] 0, 128
    %41 = vxpose.xlu0.b32.end [16/16] 0, 128
    %v42 = vpop.trf.xlu0
    %v43 = vpop.trf.xlu0
    %v44 = vpop.trf.xlu0
    %v45 = vpop.trf.xlu0
    %v46 = vpop.trf.xlu0
    %v47 = vpop.trf.xlu0
    %v48 = vpop.trf.xlu0
    %v49 = vpop.trf.xlu0
    %v50 = vpop.trf.xlu0
    %v51 = vpop.trf.xlu0
    %v52 = vpop.trf.xlu0
    %v53 = vpop.trf.xlu0
    %v54 = vpop.trf.xlu0
    %v55 = vpop.trf.xlu0
    %v56 = vpop.trf.xlu0
    %v57 = vpop.trf.xlu0
    %vm58 = vcmask 261120
    %v59 = vsel %vm58, %v24, -inf
    %60 = vmax.xlane.f32.xlu0 %v59
    %v61 = vpop.xlane.xlu0 %60
    %v62 = vlaneseq
    %v63 = vand.u32 %v62, 127
    %64 = vset.pattern.permute.xlu0 0
    %65 = vperm.xlu0 %64, %v42
    %v66 = vpop.permute.xlu0 %65
    %vm67 = vcmp.eq.s32.totalorder %v63, %v66
    %v68 = vsel %vm67, %v24, 0.0
    %v69 = vsel %vm58, %v68, 0.0
    %70 = vadd.xlane.f32.xlu0 %v69
    %v71 = vpop.xlane.xlu0 %70
    %v72 = vsub.f32 %v24, %v61
    %v73 = vmul.f32 %v72, 1.442695
    %v74 = vpow.pop %v73
    %v75 = vsel %vm58, %v74, 0.0
    %76 = vadd.xlane.f32.xlu0 %v75
    %v77 = vpop.xlane.xlu0 %76
    %v78 = vlog2.pop %v77
    %v79 = vmul.f32 %v78, 0.6931472
    %v80 = vsub.f32 %v71, %v61
    %v81 = vsub.f32 %v80, %v79
    %v82 = vmul.f32 %v81, 1.442695
    %v83 = vpow.pop %v82
    %vm84 = vcmp.gt.s32.totalorder %v42, 0
    %v85 = vsel %vm84, 0.25, 0.75
    %v86 = vmul.f32 %v81, %v85
    %v87 = vsub.f32 1.0, %v83
    %v88 = vmax.f32 %v87, 0.0
    %v89 = vmul.f32 %v88, %v88
    %v90 = vsub.f32 0.0, %v89
    %v91 = vmul.f32 %v90, %v86
    %v92 = vlaneseq
    %v93 = vshrl.u32 %v92, 7
    %s94 = smul.u32 0, 8
    %v95 = vstv %s94
    %v96 = vadd.s32 %v93, %v95
    %vm97 = vcmp.lt.s32.totalorder %v96, 8
    %v98 = vsel %vm97, %v91, 0.0
    %vm99 = vcmask 7168
    %v100 = vsel %vm99, %v98, 0.0
    %101 = vadd.xlane.f32.xlu0 %v100
    %v102 = vpop.xlane.xlu0 %101
    %v103 = vrot.slane %v102, 4
    %v104 = vadd.f32 %v102, %v103
    %v105 = vrot.slane %v104, 2
    %v106 = vadd.f32 %v104, %v105
    %v107 = vrot.slane %v106, 1
    %v108 = vadd.f32 %v106, %v107
    %s109 = vtos %v108
    %vm110 = vcmp.eq.s32.totalorder %v63, 0
    %v111 = vstv %s109
    %v112 = vsel %vm110, %v111, 0.0
    %113 = vst [vmem:[#allocation5] sm:$0x1] %v112
    // Predicated region
    $region14: #{tpu_custom_call.1} parent=1 // pred_check
      _
    $region15: #{tpu_custom_call.1} parent=1 // pred_check_branch
      %115 = sbr.rel (0) target = $region17
    $region16: #{tpu_custom_call.1} parent=1 // pred_region
      %s117 = ssub.s32 16, 16
      %118 = vsyncadd [#allocation4], %s117
      %s120 = sshll.u32 [#allocation5], 4
      %s121 = int_to_ptr.vmem [resolvable:$true] %s120
      %123 = dma.vmem_to_hbm [thread:$0]  %s121, 16, %s2, [#allocation4]
    $region17: #{tpu_custom_call.1} parent=1 // pred_fallthru
      _
    // Predicated region
    $region18: #{tpu_custom_call.1} parent=1 // pred_check
      _
    $region19: #{tpu_custom_call.1} parent=1 // pred_check_branch
      %125 = sbr.rel (0) target = $region21
    $region20: #{tpu_custom_call.1} parent=1 // pred_region
      %126 = dma.done [#allocation4], 16
    $region21: #{tpu_custom_call.1} parent=1 // pred_fallthru
      _
    %127 = vsyncpa [#allocation3], 1
    %128 = vsyncpa [#allocation4], 1

</llo_original>
